<compile_context>
chip_gen: v7x
topology: tpu7x:2x2x1
jax: 0.10.0
libtpu: 0.0.40
codegen_flags: <defaults>
</compile_context>

<pallas_src>
import math

import jax
import jax.numpy as jnp
from jax.experimental import pallas as pl
from jax.experimental.pallas import tpu as pltpu


def _round_up(x: int, m: int) -> int:
    return ((x + m - 1) // m) * m


def _sigmoid(z):
    # exp goes to the EUP; approx reciprocal also goes to the EUP slot,
    # keeping the divide off the VPU (frees VALU slots for the state update).
    return pl.reciprocal(1.0 + jnp.exp(-z), approx=True)


def _lstm_cell_kernel(xh_ref, c_ref, w_ref, b_ref, h_out_ref, c_out_ref):
    """One fused LSTMCell step on a [tb, I+H] activation tile."""
    H = c_ref.shape[-1]

    # Single fused MXU matmul: [tb, I+H] @ [I+H, 4H] -> f32 [tb, 4H].
    gates = jnp.dot(xh_ref[...], w_ref[...],
                    preferred_element_type=jnp.float32)
    gates = gates + b_ref[...]                      # bias kept in f32

    # Gate order along the 4H axis is PyTorch's (i, f, g, o).
    # For H % 128 == 0 these slices are lane-block aligned (free); for the
    # toy H=32 case the relayout is negligible.
    i_g = _sigmoid(gates[:, 0 * H:1 * H])
    f_g = _sigmoid(gates[:, 1 * H:2 * H])
    g_g = jnp.tanh(gates[:, 2 * H:3 * H])
    o_g = _sigmoid(gates[:, 3 * H:4 * H])

    c_prev = c_ref[...].astype(jnp.float32)
    c_new = f_g * c_prev + i_g * g_g
    h_new = o_g * jnp.tanh(c_new)

    # TODO(synk): for H < 128 these stores are lane-masked (vst.msk); pad H to
    # a multiple of 128 in the wrapper if output stores ever become the
    # bottleneck (largest lever on v5e's single vst slot).
    h_out_ref[...] = h_new.astype(h_out_ref.dtype)
    c_out_ref[...] = c_new.astype(c_out_ref.dtype)


def single_lstm_forward(x, h, c, w_ih, w_hh, b_ih, b_hh, *,
                        tb=None, mxu_dtype=jnp.bfloat16):
    """Pallas implementation of SingleLSTM.forward(x, (h, c)) -> (h', c')."""
    B, I = x.shape
    H = h.shape[-1]
    assert w_ih.shape == (4 * H, I)
    assert w_hh.shape == (4 * H, H)
    K = I + H

    # --- glue (plain JAX outside the kernel) --------------------------------
    # Fuse the two matmuls: [x | h] @ [W_ih^T ; W_hh^T]. Feed the MXU in bf16
    # (half the weight HBM traffic, 2x MXU rate on v6e/v7x); accumulate and do
    # all element-wise gate math in f32.
    xh = jnp.concatenate([x, h], axis=-1).astype(mxu_dtype)            # [B, K]
    w = jnp.concatenate([w_ih.T, w_hh.T], axis=0).astype(mxu_dtype)    # [K, 4H]
    b = (b_ih + b_hh).reshape(1, 4 * H).astype(jnp.float32)            # [1, 4H]
    c = c.astype(jnp.float32)

    # --- batch tile ----------------------------------------------------------
    if tb is None:
        tb = min(256, B)                 # match MXU feed height, bound VMEM
        if tb == B and B > 8:
            # ensure >= 2 batch tiles so the "parallel" axis can use both
            # v7x TensorCores (multiple of 8 for the (8,128) constraint).
            tb = _round_up(pl.cdiv(B, 2), 8)
    else:
        tb = int(tb)
        if tb >= B:
            tb = B                       # full-extent block is always legal
        else:
            tb = max(8, (tb // 8) * 8)   # sublane constraint when tiling
            if tb >= B:
                tb = B

    grid = (pl.cdiv(B, tb),)

    # --- VMEM budget ---------------------------------------------------------
    w_itemsize = jnp.dtype(mxu_dtype).itemsize
    est_vmem = (
        2 * (K * 4 * H * w_itemsize + 4 * H * 4)      # resident W + bias (2 bufs)
        + 2 * (tb * K * w_itemsize + tb * H * 4)      # xh + c input tiles
        + 2 * (2 * tb * H * 4)                        # h'/c' output tiles
    )
    compiler_kwargs = dict(dimension_semantics=("parallel",))
    if est_vmem > 12 * 1024 * 1024:
        # TODO(synk): for very large H, also tile the 4H (gate-column) axis with
        # an extra grid dimension instead of keeping the full weight resident.
        compiler_kwargs["vmem_limit_bytes"] = int(est_vmem * 5 // 4)

    # TODO(synk): if this cell is stepped over a sequence, move the timestep
    # loop inside the kernel (grid axis over T, h/c carried in VMEM scratch,
    # input_output_aliases for the final state) so the fused weights are DMA'd
    # from HBM once per sequence instead of once per call.

    h_new, c_new = pl.pallas_call(
        _lstm_cell_kernel,
        out_shape=(
            jax.ShapeDtypeStruct((B, H), x.dtype),
            jax.ShapeDtypeStruct((B, H), x.dtype),
        ),
        grid_spec=pltpu.PrefetchScalarGridSpec(
            num_scalar_prefetch=0,
            grid=grid,
            in_specs=[
                pl.BlockSpec((tb, K), lambda i: (i, 0)),      # [x | h] tile
                pl.BlockSpec((tb, H), lambda i: (i, 0)),      # c tile
                pl.BlockSpec((K, 4 * H), lambda i: (0, 0)),   # fused weights (resident)
                pl.BlockSpec((1, 4 * H), lambda i: (0, 0)),   # fused bias
            ],
            out_specs=[
                pl.BlockSpec((tb, H), lambda i: (i, 0)),      # h'
                pl.BlockSpec((tb, H), lambda i: (i, 0)),      # c'
            ],
        ),
        compiler_params=pltpu.CompilerParams(**compiler_kwargs),
    )(xh, c, w, b)
    return h_new, c_new


def _reference_lstm_cell(x, h, c, w_ih, w_hh, b_ih, b_hh):
    gates = x @ w_ih.T + b_ih + h @ w_hh.T + b_hh
    H = h.shape[-1]
    i = jax.nn.sigmoid(gates[:, 0 * H:1 * H])
    f = jax.nn.sigmoid(gates[:, 1 * H:2 * H])
    g = jnp.tanh(gates[:, 2 * H:3 * H])
    o = jax.nn.sigmoid(gates[:, 3 * H:4 * H])
    c_new = f * c + i * g
    h_new = o * jnp.tanh(c_new)
    return h_new, c_new


if __name__ == "__main__":
    # Small shapes consistent with the module: batch=8, input_size=32, state_size=32.
    B, I, H = 8, 32, 32

    key = jax.random.PRNGKey(0)
    k_x, k_h, k_c, k_wih, k_whh, k_bih, k_bhh = jax.random.split(key, 7)

    # Deterministic params matching nn.LSTMCell's U(-1/sqrt(H), 1/sqrt(H)) init.
    bound = 1.0 / math.sqrt(H)
    w_ih = jax.random.uniform(k_wih, (4 * H, I), jnp.float32, -bound, bound)
    w_hh = jax.random.uniform(k_whh, (4 * H, H), jnp.float32, -bound, bound)
    b_ih = jax.random.uniform(k_bih, (4 * H,), jnp.float32, -bound, bound)
    b_hh = jax.random.uniform(k_bhh, (4 * H,), jnp.float32, -bound, bound)

    x = jax.random.normal(k_x, (B, I), jnp.float32)
    # init_memory would give zeros; use small random state to exercise the cell path.
    h0 = jax.random.normal(k_h, (B, H), jnp.float32) * 0.1
    c0 = jax.random.normal(k_c, (B, H), jnp.float32) * 0.1

    h_ref, c_ref = _reference_lstm_cell(x, h0, c0, w_ih, w_hh, b_ih, b_hh)

    # Exact-precision path (f32 MXU feed) -- tight check of the semantics.
    h1, c1 = single_lstm_forward(x, h0, c0, w_ih, w_hh, b_ih, b_hh,
                                 mxu_dtype=jnp.float32)
    jax.block_until_ready((h1, c1))
    assert jnp.allclose(h1, h_ref, atol=5e-3, rtol=5e-3)
    assert jnp.allclose(c1, c_ref, atol=5e-3, rtol=5e-3)

    # Default fast path (bf16 MXU feed, f32 accumulate + gate math).
    h2, c2 = single_lstm_forward(x, h0, c0, w_ih, w_hh, b_ih, b_hh)
    jax.block_until_ready((h2, c2))
    assert jnp.allclose(h2, h_ref, atol=3e-2, rtol=3e-2)
    assert jnp.allclose(c2, c_ref, atol=3e-2, rtol=3e-2)

    print("KERNEL_OK")
</pallas_src>

<mosaic_0001>
module attributes {stable_mosaic.version = 11 : i64} {
  func.func @_lstm_cell_kernel(%arg0: i32, %arg1: memref<8x64xf32, #tpu.memory_space<vmem>>, %arg2: memref<8x32xf32, #tpu.memory_space<vmem>>, %arg3: memref<64x128xf32, #tpu.memory_space<vmem>>, %arg4: memref<1x128xf32, #tpu.memory_space<vmem>>, %arg5: memref<8x32xf32, #tpu.memory_space<vmem>>, %arg6: memref<8x32xf32, #tpu.memory_space<vmem>>) attributes {dimension_semantics = [#tpu.dimension_semantics<parallel>], iteration_bounds = array<i64: 1>, scalar_prefetch = 0 : i64, scratch_operands = 0 : i64, tpu.core_type = #tpu.core_type<tc>, window_params = [{transform_indices = @transform_0, window_bounds = array<i64: 8, 64>}, {transform_indices = @transform_1, window_bounds = array<i64: 8, 32>}, {pipeline_mode = #tpu.pipeline_mode<synchronous>, transform_indices = @transform_2, window_bounds = array<i64: 64, 128>}, {pipeline_mode = #tpu.pipeline_mode<synchronous>, transform_indices = @transform_3, window_bounds = array<i64: 1, 128>}, {transform_indices = @transform_4, window_bounds = array<i64: 8, 32>}, {transform_indices = @transform_5, window_bounds = array<i64: 8, 32>}]} {
    %c0 = arith.constant 0 : index
    %c0_0 = arith.constant 0 : index
    %0 = vector.load %arg1[%c0, %c0_0] : memref<8x64xf32, #tpu.memory_space<vmem>>, vector<8x64xf32>
    %c0_1 = arith.constant 0 : index
    %c0_2 = arith.constant 0 : index
    %1 = vector.load %arg3[%c0_1, %c0_2] : memref<64x128xf32, #tpu.memory_space<vmem>>, vector<64x128xf32>
    %cst = arith.constant dense<0.000000e+00> : vector<8x128xf32>
    %2 = tpu.matmul %0, %1, %cst {dimension_numbers = #tpu.dot_dimension_numbers<[1], [0], [0], [1], [0, 0, 1, 1], [], []>} : vector<8x64xf32>, vector<64x128xf32>, vector<8x128xf32> -> vector<8x128xf32>
    %c0_3 = arith.constant 0 : index
    %c0_4 = arith.constant 0 : index
    %3 = vector.load %arg4[%c0_3, %c0_4] : memref<1x128xf32, #tpu.memory_space<vmem>>, vector<1x128xf32>
    %4 = vector.broadcast %3 : vector<1x128xf32> to vector<8x128xf32>
    %5 = arith.addf %2, %4 : vector<8x128xf32>
    %6 = vector.extract_strided_slice %5 {offsets = [0, 0], sizes = [8, 32], strides = [1, 1]} : vector<8x128xf32> to vector<8x32xf32>
    %cst_5 = arith.constant 0.000000e+00 : f32
    %7 = vector.broadcast %cst_5 : f32 to vector<8x32xf32>
    %8 = arith.subf %7, %6 : vector<8x32xf32>
    %9 = math.exp %8 : vector<8x32xf32>
    %cst_6 = arith.constant 1.000000e+00 : f32
    %10 = vector.broadcast %cst_6 : f32 to vector<8x32xf32>
    %11 = arith.addf %10, %9 : vector<8x32xf32>
    %12 = tpu.reciprocal %11 {approx = true} : vector<8x32xf32> -> vector<8x32xf32>
    %13 = vector.extract_strided_slice %5 {offsets = [0, 32], sizes = [8, 32], strides = [1, 1]} : vector<8x128xf32> to vector<8x32xf32>
    %cst_7 = arith.constant 0.000000e+00 : f32
    %14 = vector.broadcast %cst_7 : f32 to vector<8x32xf32>
    %15 = arith.subf %14, %13 : vector<8x32xf32>
    %16 = math.exp %15 : vector<8x32xf32>
    %cst_8 = arith.constant 1.000000e+00 : f32
    %17 = vector.broadcast %cst_8 : f32 to vector<8x32xf32>
    %18 = arith.addf %17, %16 : vector<8x32xf32>
    %19 = tpu.reciprocal %18 {approx = true} : vector<8x32xf32> -> vector<8x32xf32>
    %20 = vector.extract_strided_slice %5 {offsets = [0, 64], sizes = [8, 32], strides = [1, 1]} : vector<8x128xf32> to vector<8x32xf32>
    %21 = math.tanh %20 : vector<8x32xf32>
    %22 = vector.extract_strided_slice %5 {offsets = [0, 96], sizes = [8, 32], strides = [1, 1]} : vector<8x128xf32> to vector<8x32xf32>
    %cst_9 = arith.constant 0.000000e+00 : f32
    %23 = vector.broadcast %cst_9 : f32 to vector<8x32xf32>
    %24 = arith.subf %23, %22 : vector<8x32xf32>
    %25 = math.exp %24 : vector<8x32xf32>
    %cst_10 = arith.constant 1.000000e+00 : f32
    %26 = vector.broadcast %cst_10 : f32 to vector<8x32xf32>
    %27 = arith.addf %26, %25 : vector<8x32xf32>
    %28 = tpu.reciprocal %27 {approx = true} : vector<8x32xf32> -> vector<8x32xf32>
    %c0_11 = arith.constant 0 : index
    %c0_12 = arith.constant 0 : index
    %29 = vector.load %arg2[%c0_11, %c0_12] : memref<8x32xf32, #tpu.memory_space<vmem>>, vector<8x32xf32>
    %30 = arith.mulf %19, %29 : vector<8x32xf32>
    %31 = arith.mulf %12, %21 : vector<8x32xf32>
    %32 = arith.addf %30, %31 : vector<8x32xf32>
    %33 = math.tanh %32 : vector<8x32xf32>
    %34 = arith.mulf %28, %33 : vector<8x32xf32>
    %c0_13 = arith.constant 0 : index
    %c0_14 = arith.constant 0 : index
    %35 = vector.load %arg5[%c0_13, %c0_14] : memref<8x32xf32, #tpu.memory_space<vmem>>, vector<8x32xf32>
    tpu.vector_store %arg5[%c0_13, %c0_14], %34 {strides = array<i32>} : memref<8x32xf32, #tpu.memory_space<vmem>>, vector<8x32xf32>,
    %c0_15 = arith.constant 0 : index
    %c0_16 = arith.constant 0 : index
    %36 = vector.load %arg6[%c0_15, %c0_16] : memref<8x32xf32, #tpu.memory_space<vmem>>, vector<8x32xf32>
    tpu.vector_store %arg6[%c0_15, %c0_16], %32 {strides = array<i32>} : memref<8x32xf32, #tpu.memory_space<vmem>>, vector<8x32xf32>,
    return
  }
  func.func @transform_0(%arg0: i32) -> (i32, i32) {
    %c0_i32 = arith.constant 0 : i32
    %c0_i32_0 = arith.constant 0 : i32
    return %arg0, %c0_i32 : i32, i32
  }
  func.func @transform_1(%arg0: i32) -> (i32, i32) {
    %c0_i32 = arith.constant 0 : i32
    %c0_i32_0 = arith.constant 0 : i32
    return %arg0, %c0_i32 : i32, i32
  }
  func.func @transform_2(%arg0: i32) -> (i32, i32) {
    %c0_i32 = arith.constant 0 : i32
    %c0_i32_0 = arith.constant 0 : i32
    %c0_i32_1 = arith.constant 0 : i32
    return %c0_i32, %c0_i32_0 : i32, i32
  }
  func.func @transform_3(%arg0: i32) -> (i32, i32) {
    %c0_i32 = arith.constant 0 : i32
    %c0_i32_0 = arith.constant 0 : i32
    %c0_i32_1 = arith.constant 0 : i32
    return %c0_i32, %c0_i32_0 : i32, i32
  }
  func.func @transform_4(%arg0: i32) -> (i32, i32) {
    %c0_i32 = arith.constant 0 : i32
    %c0_i32_0 = arith.constant 0 : i32
    return %arg0, %c0_i32 : i32, i32
  }
  func.func @transform_5(%arg0: i32) -> (i32, i32) {
    %c0_i32 = arith.constant 0 : i32
    %c0_i32_0 = arith.constant 0 : i32
    return %arg0, %c0_i32 : i32, i32
  }
}

</mosaic_0001>

<llo_original>
// kernel: tpu_custom_call.1
$region0: #{tpu_custom_call.1}
  #allocation0 [shape = 'u32[]', space=smem, size = 0x4, offset = 0x4, fixed_abs, tag = 'smem constant byte address 0x4 - core index']
  #allocation1 [shape = 'u32[144,128]{1,0:T(1,128)}', space=vmem, size = 0x12000, scoped, tag = 'internal scratch']
  %s0 = inlined_call_operand.hbm [shape: f32[8,64], index: 0, kind: input, shape index: {}]
  %s1 = inlined_call_operand.hbm [shape: f32[8,32], index: 1, kind: input, shape index: {}]
  %s2 = inlined_call_operand.hbm [shape: f32[64,128], index: 2, kind: input, shape index: {}]
  %s3 = inlined_call_operand.vmem [shape: f32[1,128], index: 3, kind: input, shape index: {}]
  %s4 = inlined_call_operand.hbm [shape: f32[8,32], index: 4, kind: output, shape index: {0}]
  %s5 = inlined_call_operand.hbm [shape: f32[8,32], index: 5, kind: output, shape index: {1}]
  %6 = xla_tuple %s4, %s5
  %s7 = sld [smem:[#allocation0]]
  $region46: #{tpu_custom_call.1} parent=0
    _
  %s9 = ssub.s32 1, %s7
  %s10 = scalar_select 0, %s9, %s7
  $region1: #{tpu_custom_call.1} parent=0
    #allocation2 [shape = 'u8[4096]{0}', space=vmem, size = 0x1000, scoped, tag = 'input window, operand 0, single buffered']
    #allocation3 [shape = 's32[1]{0}', space=sflag, size = 0x4, scoped, tag = 'scoped memory for tpu_custom_call.1']
    #allocation4 [shape = 's32[1]{0}', space=sflag, size = 0x4, scoped, tag = 'scoped memory for tpu_custom_call.1']
    #allocation5 [shape = 'u8[4096]{0}', space=vmem, size = 0x1000, scoped, tag = 'input window, operand 1, single buffered']
    #allocation6 [shape = 's32[1]{0}', space=sflag, size = 0x4, scoped, tag = 'scoped memory for tpu_custom_call.1']
    #allocation7 [shape = 'u8[32768]{0}', space=vmem, size = 0x8000, scoped, tag = 'input window, operand 2, single buffered']
    #allocation8 [shape = 'u8[4096]{0}', space=vmem, size = 0x1000, scoped, tag = 'output window, operand 0, single buffered']
    #allocation9 [shape = 'u8[4096]{0}', space=vmem, size = 0x1000, scoped, tag = 'output window, operand 1, single buffered']
    #allocation10 [shape = 's32[1]{0}', space=sflag, size = 0x4, scoped, tag = 'scoped memory for tpu_custom_call.1']
    %11 = vsyncpa [#allocation3], 0
    %12 = vsyncpa [#allocation6], 0
    %13 = vsyncpa [#allocation4], 0
    %14 = vsyncpa [#allocation10], 0
    // Predicated region
    $region2: #{tpu_custom_call.1} parent=1 // pred_check
      _
    $region3: #{tpu_custom_call.1} parent=1 // pred_check_branch
      %16 = sbr.rel (0) target = $region5
    $region4: #{tpu_custom_call.1} parent=1 // pred_region
      %s18 = ssub.s32 128, 128
      %19 = vsyncadd [#allocation3], %s18
      %s21 = sshll.u32 [#allocation2], 4
      %s22 = int_to_ptr.vmem [resolvable:$true] %s21
      %24 = dma.hbm_to_vmem [thread:$0]  %s0, 128, %s22, [#allocation3]
    $region5: #{tpu_custom_call.1} parent=1 // pred_fallthru
      _
    // Predicated region
    $region6: #{tpu_custom_call.1} parent=1 // pred_check
      _
    $region7: #{tpu_custom_call.1} parent=1 // pred_check_branch
      %26 = sbr.rel (0) target = $region9
    $region8: #{tpu_custom_call.1} parent=1 // pred_region
      %s28 = ssub.s32 128, 128
      %29 = vsyncadd [#allocation6], %s28
      %s31 = sshll.u32 [#allocation5], 4
      %s32 = int_to_ptr.vmem [resolvable:$true] %s31
      %34 = dma.hbm_to_vmem [thread:$0]  %s1, 128, %s32, [#allocation6]
    $region9: #{tpu_custom_call.1} parent=1 // pred_fallthru
      _
    // Predicated region
    $region10: #{tpu_custom_call.1} parent=1 // pred_check
      _
    $region11: #{tpu_custom_call.1} parent=1 // pred_check_branch
      %36 = sbr.rel (0) target = $region13
    $region12: #{tpu_custom_call.1} parent=1 // pred_region
      %s38 = ssub.s32 1024, 1024
      %39 = vsyncadd [#allocation6], %s38
      %s40 = sshll.u32 [#allocation7], 4
      %s41 = int_to_ptr.vmem [resolvable:$true] %s40
      %46 = dma.hbm_to_vmem [thread:$0]  %s2, 1024, %s41, [#allocation6], 128, 128, 8
    $region13: #{tpu_custom_call.1} parent=1 // pred_fallthru
      _
    // Predicated region
    $region14: #{tpu_custom_call.1} parent=1 // pred_check
      _
    $region15: #{tpu_custom_call.1} parent=1 // pred_check_branch
      %48 = sbr.rel (0) target = $region17
    $region16: #{tpu_custom_call.1} parent=1 // pred_region
      _
    $region17: #{tpu_custom_call.1} parent=1 // pred_fallthru
      _
    // Predicated region
    $region18: #{tpu_custom_call.1} parent=1 // pred_check
      _
    $region19: #{tpu_custom_call.1} parent=1 // pred_check_branch
      %50 = sbr.rel (0) target = $region21
    $region20: #{tpu_custom_call.1} parent=1 // pred_region
      %51 = dma.done [#allocation3], 128
    $region21: #{tpu_custom_call.1} parent=1 // pred_fallthru
      _
    // Predicated region
    $region22: #{tpu_custom_call.1} parent=1 // pred_check
      _
    $region23: #{tpu_custom_call.1} parent=1 // pred_check_branch
      %53 = sbr.rel (0) target = $region25
    $region24: #{tpu_custom_call.1} parent=1 // pred_region
      %54 = dma.done [#allocation6], 128
    $region25: #{tpu_custom_call.1} parent=1 // pred_fallthru
      _
    // Predicated region
    $region26: #{tpu_custom_call.1} parent=1 // pred_check
      _
    $region27: #{tpu_custom_call.1} parent=1 // pred_check_branch
      %56 = sbr.rel (0) target = $region29
    $region28: #{tpu_custom_call.1} parent=1 // pred_region
      %57 = dma.done [#allocation6], 1024
    $region29: #{tpu_custom_call.1} parent=1 // pred_fallthru
      _
    %v58 = vld [vmem:[#allocation2] sm:$0xff]
    %v59 = vld [vmem:[#allocation7] sm:$0xff]
    %v60 = vld [vmem:[#allocation7 + $0x8] sm:$0xff]
    %v61 = vld [vmem:[#allocation7 + $0x10] sm:$0xff]
    %v62 = vld [vmem:[#allocation7 + $0x18] sm:$0xff]
    %v63 = vld [vmem:[#allocation7 + $0x20] sm:$0xff]
    %v64 = vld [vmem:[#allocation7 + $0x28] sm:$0xff]
    %v65 = vld [vmem:[#allocation7 + $0x30] sm:$0xff]
    %v66 = vld [vmem:[#allocation7 + $0x38] sm:$0xff]
    %v67 = vld [vmem:[%s3] sm:$0x1]
    %v69 = vlaneseq
    %v70 = vshrl.u32 %v69, 7
    %v71 = vsub.s32 0, %v70
    %v72 = vrot.slane %v67, %v71
    %vm74 = vcmask 523264
    %v76 = vsel %vm74, %v58, 0
    %78 = vmatprep.subr.mxu0 0.0
    %79 = vmatpush1.msra.mxu0 %v59
    %80 = vmatprep.subr.mxu0 0.0
    %81 = vmatpush1.msra.mxu0 %v60
    %82 = vmatprep.subr.mxu0 0.0
    %83 = vmatpush1.msra.mxu0 %v61
    %84 = vmatprep.subr.mxu0 0.0
    %85 = vmatpush1.msra.mxu0 %v62
    %86 = vmatprep.subr.mxu0 0.0
    %87 = vmatpush1.msra.mxu0 %v63
    %88 = vmatprep.subr.mxu0 0.0
    %89 = vmatpush1.msra.mxu0 %v64
    %90 = vmatprep.subr.mxu0 0.0
    %91 = vmatpush1.msra.mxu0 %v65
    %92 = vmatprep.subr.mxu0 0.0
    %93 = vmatpush1.msra.mxu0 %v66
    %94 = vmatprep.subr.mxu0 0.0
    %95 = vmatpush1.msra.mxu0 0.0
    %96 = vmatprep.subr.mxu0 0.0
    %97 = vmatpush1.msra.mxu0 0.0
    %98 = vmatprep.subr.mxu0 0.0
    %99 = vmatpush1.msra.mxu0 0.0
    %100 = vmatprep.subr.mxu0 0.0
    %101 = vmatpush1.msra.mxu0 0.0
    %102 = vmatprep.subr.mxu0 0.0
    %103 = vmatpush1.msra.mxu0 0.0
    %104 = vmatprep.subr.mxu0 0.0
    %105 = vmatpush1.msra.mxu0 0.0
    %106 = vmatprep.subr.mxu0 0.0
    %107 = vmatpush1.msra.mxu0 0.0
    %108 = vmatprep.subr.mxu0 0.0
    %109 = vmatpush1.msra.mxu0 0.0
    %110 = vmatprep.subr.mxu0 0.0
    %111 = vmatpush1.msra.mxu0 0.0
    %112 = vmatprep.subr.mxu0 0.0
    %113 = vmatpush1.msra.mxu0 0.0
    %114 = vmatprep.subr.mxu0 0.0
    %115 = vmatpush1.msra.mxu0 0.0
    %116 = vmatprep.subr.mxu0 0.0
    %117 = vmatpush1.msra.mxu0 0.0
    %118 = vmatprep.subr.mxu0 0.0
    %119 = vmatpush1.msra.mxu0 0.0
    %120 = vmatprep.subr.mxu0 0.0
    %121 = vmatpush1.msra.mxu0 0.0
    %122 = vmatprep.subr.mxu0 0.0
    %123 = vmatpush1.msra.mxu0 0.0
    %124 = vmatprep.subr.mxu0 0.0
    %125 = vmatpush1.msra.mxu0 0.0
    %126 = vmatprep.subr.mxu0 0.0
    %127 = vmatpush1.msra.mxu0 0.0
    %128 = vmatprep.subr.mxu0 0.0
    %129 = vmatpush1.msra.mxu0 0.0
    %130 = vmatprep.subr.mxu0 0.0
    %131 = vmatpush1.msra.mxu0 0.0
    %132 = vmatprep.subr.mxu0 0.0
    %133 = vmatpush1.msra.mxu0 0.0
    %134 = vmatprep.subr.mxu0 0.0
    %135 = vmatpush1.msra.mxu0 0.0
    %136 = vmatprep.subr.mxu0 0.0
    %137 = vmatpush1.msra.mxu0 0.0
    %138 = vmatprep.subr.mxu0 0.0
    %139 = vmatpush1.msra.mxu0 0.0
    %140 = vmatprep.subr.mxu0 0.0
    %141 = vmatpush1.msra.mxu0 0.0
    %142 = vmatprep.mubr.f32.mxu0 0.0
    %143 = vmatmul.mubr.f32.gmra.mrb[0].mxu0 %v76
    %v144 = vpop.f32.mrb[0].mxu0
    %v145 = vadd.f32 %v72, %v144
    %v146 = vpop.f32.mrb[0].mxu0
    %147 = vdwg.mxu0
    %v148 = vsub.f32 0.0, %v145
    %v149 = vmul.f32 %v148, 1.442695
    %v150 = vpow.pop %v149
    %v151 = vadd.f32 %v150, 1.0
    %v152 = vrcp.pop %v151
    %v153 = vtanh.pop %v145
    %v154 = vld [vmem:[#allocation5] sm:$0xff]
    %156 = vrot.lane.b32.xlu0 %v154, 32
    %v157 = vpop.permute.xlu0 %156
    %v159 = vmul.f32 %v152, %v157
    %161 = vrot.lane.b32.xlu0 %v153, 64
    %v162 = vpop.permute.xlu0 %161
    %v164 = vmul.f32 %v152, %v162
    %166 = vrot.lane.b32.xlu0 %v164, 32
    %v167 = vpop.permute.xlu0 %166
    %v169 = vadd.f32 %v159, %v167
    %v170 = vtanh.pop %v169
    %172 = vrot.lane.b32.xlu0 %v170, 64
    %v173 = vpop.permute.xlu0 %172
    %v175 = vmul.f32 %v152, %v173
    %177 = vrot.lane.b32.xlu0 %v175, 32
    %v178 = vpop.permute.xlu0 %177
    %vm180 = vcmask 261120
    %181 = vst.msk [vmem:[#allocation8] sm:$0xff] %vm180, %v178
    %183 = vrot.lane.b32.xlu0 %v169, 96
    %v184 = vpop.permute.xlu0 %183
    %186 = vst.msk [vmem:[#allocation9] sm:$0xff] %vm180, %v184
    // Predicated region
    $region30: #{tpu_custom_call.1} parent=1 // pred_check
      _
    $region31: #{tpu_custom_call.1} parent=1 // pred_check_branch
      %188 = sbr.rel (0) target = $region33
    $region32: #{tpu_custom_call.1} parent=1 // pred_region
      %s190 = ssub.s32 128, 128
      %191 = vsyncadd [#allocation4], %s190
      %s193 = sshll.u32 [#allocation8], 4
      %s194 = int_to_ptr.vmem [resolvable:$true] %s193
      %196 = dma.vmem_to_hbm [thread:$0]  %s194, 128, %s4, [#allocation4]
    $region33: #{tpu_custom_call.1} parent=1 // pred_fallthru
      _
    // Predicated region
    $region34: #{tpu_custom_call.1} parent=1 // pred_check
      _
    $region35: #{tpu_custom_call.1} parent=1 // pred_check_branch
      %198 = sbr.rel (0) target = $region37
    $region36: #{tpu_custom_call.1} parent=1 // pred_region
      %s200 = ssub.s32 128, 128
      %201 = vsyncadd [#allocation10], %s200
      %s203 = sshll.u32 [#allocation9], 4
      %s204 = int_to_ptr.vmem [resolvable:$true] %s203
      %206 = dma.vmem_to_hbm [thread:$0]  %s204, 128, %s5, [#allocation10]
    $region37: #{tpu_custom_call.1} parent=1 // pred_fallthru
      _
    // Predicated region
    $region38: #{tpu_custom_call.1} parent=1 // pred_check
      _
    $region39: #{tpu_custom_call.1} parent=1 // pred_check_branch
      %208 = sbr.rel (0) target = $region41
    $region40: #{tpu_custom_call.1} parent=1 // pred_region
      %209 = dma.done [#allocation4], 128
    $region41: #{tpu_custom_call.1} parent=1 // pred_fallthru
      _
    // Predicated region
    $region42: #{tpu_custom_call.1} parent=1 // pred_check
      _
    $region43: #{tpu_custom_call.1} parent=1 // pred_check_branch
      %211 = sbr.rel (0) target = $region45
    $region44: #{tpu_custom_call.1} parent=1 // pred_region
      %212 = dma.done [#allocation10], 128
    $region45: #{tpu_custom_call.1} parent=1 // pred_fallthru
      _
    %213 = vsyncpa [#allocation3], 1
    %214 = vsyncpa [#allocation6], 1
    %215 = vsyncpa [#allocation4], 1
    %216 = vsyncpa [#allocation10], 1

</llo_original>
